<compile_context>
chip_gen: v6e
topology: v6e:2x2x1
jax: 0.10.0
libtpu: 0.0.40
codegen_flags: <defaults>
</compile_context>

<pallas_src>
import jax
import jax.numpy as jnp
from jax.experimental import pallas as pl
from jax.experimental.pallas import tpu as pltpu


# --------------------------- VMEM budgeting -------------------------------- #

def _vmem_limit_bytes():
    """Per-generation scoped-VMEM budget: physical capacity minus headroom,
    capped at 100 MiB (v5e/v6e have 128 MiB, v7x has 64 MiB)."""
    mib = 1024 * 1024
    try:
        cap = int(pltpu.get_tpu_info().vmem_capacity_bytes)
    except Exception:
        cap = 64 * mib          # conservative fallback (v7x-sized)
    return max(32 * mib, min(cap - 16 * mib, 100 * mib))


# ----------------------------- kernels ------------------------------------- #

def xw_kernel(x_ref, w_ref, s_ref):
    # s_tile = x_tile @ W1   (feature transform; f32 accumulate, bf16 store)
    s_ref[...] = jnp.dot(
        x_ref[...], w_ref[...], preferred_element_type=jnp.float32
    ).astype(s_ref.dtype)


def gc1_kernel(adj_ref, s1_ref, b1_ref, w2_ref, s2_ref, acc_ref):
    # acc += adj[i, k-tile] @ s1[k-tile]; at k==last: h1 = relu(acc+b1), s2 = h1@W2
    k = pl.program_id(1)

    @pl.when(k == 0)
    def _():
        acc_ref[...] = jnp.zeros_like(acc_ref)

    acc_ref[...] += jnp.dot(adj_ref[...], s1_ref[...],
                            preferred_element_type=jnp.float32)

    @pl.when(k == pl.num_programs(1) - 1)
    def _():
        h1 = jnp.maximum(acc_ref[...] + b1_ref[...], 0.0)
        # Dropout: eval mode (training=False) -> identity.
        # TODO(synk): training-mode dropout needs pltpu.prng_seed + prng_random_bits.
        s2_ref[...] = jnp.dot(h1.astype(w2_ref.dtype), w2_ref[...],
                              preferred_element_type=jnp.float32
                              ).astype(s2_ref.dtype)


def gc2_fc_kernel(adj_ref, s2_ref, b2_ref, wfc_ref, bfc_ref, out_ref, acc_ref):
    # acc += adj[i, k-tile] @ s2[k-tile]; at k==last: pred row = wfc @ (acc+b2)^T + bfc
    k = pl.program_id(1)

    @pl.when(k == 0)
    def _():
        acc_ref[...] = jnp.zeros_like(acc_ref)

    acc_ref[...] += jnp.dot(adj_ref[...], s2_ref[...],
                            preferred_element_type=jnp.float32)

    @pl.when(k == pl.num_programs(1) - 1)
    def _():
        h2 = acc_ref[...] + b2_ref[...]                        # (tm, nclass) f32
        # fc head (nclass -> 1): (1, nclass) @ (nclass, tm) -> lane-dense (1, tm).
        pred = jnp.dot(wfc_ref[...], h2.T,
                       preferred_element_type=jnp.float32)
        out_ref[...] = (pred + bfc_ref[...]).reshape(out_ref.shape)


# ----------------------------- wrapper -------------------------------------- #

def gcn_forward(x, adj, w1, b1, w2, b2, wfc, bfc, *, tm=512, tk=2048):
    """Eval-mode GCN forward: pred = fc(gc2(relu(gc1(x, adj)), adj)).view(-1)."""
    N, nfeat = x.shape
    nhid = w1.shape[1]
    nclass = w2.shape[1]
    assert adj.shape == (N, N)

    tm = min(tm, N)
    tk = min(tk, N)
    # TODO(synk): general (non-divisible) N needs pl.cdiv grids + edge masking.
    assert N % tm == 0 and tm % 8 == 0, "row tile must divide N, multiple of 8"
    assert N % tk == 0 and (tk % 128 == 0 or tk == N), "k tile must divide N, mult of 128"

    vmem_limit = _vmem_limit_bytes()
    cparams_1d = pltpu.CompilerParams(
        dimension_semantics=("parallel",), vmem_limit_bytes=vmem_limit)
    cparams_2d = pltpu.CompilerParams(
        dimension_semantics=("parallel", "arbitrary"), vmem_limit_bytes=vmem_limit)

    bf16, f32 = jnp.bfloat16, jnp.float32
    xb, adjb, w1b, w2b = (t.astype(bf16) for t in (x, adj, w1, w2))
    b1f = b1.astype(f32).reshape(1, nhid)
    b2f = b2.astype(f32).reshape(1, nclass)
    wfc_row = wfc.astype(f32).reshape(1, nclass)   # (nclass,1) -> (1,nclass) row
    bfc_f = bfc.astype(f32).reshape(1, 1)

    grid_rows = (N // tm,)
    grid_2d = (N // tm, N // tk)

    # Stage 1: s1 = x @ W1   (tiny pass, row-tiled)
    s1 = pl.pallas_call(
        xw_kernel,
        out_shape=jax.ShapeDtypeStruct((N, nhid), bf16),
        grid=grid_rows,
        in_specs=[pl.BlockSpec((tm, nfeat), lambda i: (i, 0)),
                  pl.BlockSpec((nfeat, nhid), lambda i: (0, 0))],
        out_specs=pl.BlockSpec((tm, nhid), lambda i: (i, 0)),
        compiler_params=cparams_1d,
    )(xb, w1b)

    # Stage 2: s2 = relu(adj @ s1 + b1) @ W2   (K-tiled, f32 scratch accumulator)
    s2 = pl.pallas_call(
        gc1_kernel,
        out_shape=jax.ShapeDtypeStruct((N, nclass), bf16),
        grid=grid_2d,
        in_specs=[pl.BlockSpec((tm, tk), lambda i, k: (i, k)),       # adj tile
                  pl.BlockSpec((tk, nhid), lambda i, k: (k, 0)),     # s1 k-slab
                  pl.BlockSpec((1, nhid), lambda i, k: (0, 0)),      # b1
                  pl.BlockSpec((nhid, nclass), lambda i, k: (0, 0))],  # W2
        out_specs=pl.BlockSpec((tm, nclass), lambda i, k: (i, 0)),
        scratch_shapes=[pltpu.VMEM((tm, nhid), jnp.float32)],
        compiler_params=cparams_2d,
        cost_estimate=pl.CostEstimate(
            flops=2 * N * N * nhid + 2 * N * nhid * nclass,
            transcendentals=0,
            bytes_accessed=2 * N * N + 2 * N * nhid + 2 * N * nclass),
    )(adjb, s1, b1f, w2b)

    # Stage 3: pred = (adj @ s2 + b2) @ wfc + bfc   (K-tiled, lane-dense output)
    pred = pl.pallas_call(
        gc2_fc_kernel,
        out_shape=jax.ShapeDtypeStruct((N // tm, 1, tm), f32),
        grid=grid_2d,
        in_specs=[pl.BlockSpec((tm, tk), lambda i, k: (i, k)),       # adj tile
                  pl.BlockSpec((tk, nclass), lambda i, k: (k, 0)),   # s2 k-slab
                  pl.BlockSpec((1, nclass), lambda i, k: (0, 0)),    # b2
                  pl.BlockSpec((1, nclass), lambda i, k: (0, 0)),    # wfc row
                  pl.BlockSpec((1, 1), lambda i, k: (0, 0))],        # bfc
        out_specs=pl.BlockSpec((1, 1, tm), lambda i, k: (i, 0, 0)),
        scratch_shapes=[pltpu.VMEM((tm, nclass), jnp.float32)],
        compiler_params=cparams_2d,
        cost_estimate=pl.CostEstimate(
            flops=2 * N * N * nclass + 2 * N * nclass,
            transcendentals=0,
            bytes_accessed=2 * N * N + 2 * N * nclass + 4 * N),
    )(adjb, s2, b2f, wfc_row, bfc_f)

    return pred.reshape(-1)   # .view(-1) in the PyTorch module


# ---------------------------- references ------------------------------------ #

def gcn_reference_f32(x, adj, w1, b1, w2, b2, wfc, bfc):
    h1 = jnp.maximum(adj @ (x @ w1) + b1, 0.0)
    h2 = adj @ (h1 @ w2) + b2
    return (h2 @ wfc + bfc).reshape(-1)


def gcn_reference_bf16(x, adj, w1, b1, w2, b2, wfc, bfc):
    # Mirrors the kernel's bf16-input / f32-accumulate numerics.
    bf16, f32 = jnp.bfloat16, jnp.float32
    xb, ab, w1b, w2b = (t.astype(bf16) for t in (x, adj, w1, w2))
    s1 = jnp.dot(xb, w1b, preferred_element_type=f32).astype(bf16)
    h1 = jnp.maximum(jnp.dot(ab, s1, preferred_element_type=f32) + b1, 0.0)
    s2 = jnp.dot(h1.astype(bf16), w2b, preferred_element_type=f32).astype(bf16)
    h2 = jnp.dot(ab, s2, preferred_element_type=f32) + b2
    pred = jnp.sum(h2 * wfc.reshape(1, -1), axis=-1, keepdims=True) + bfc
    return pred.reshape(-1)


# ------------------------------- demo ---------------------------------------- #

if __name__ == "__main__":
    # Small, module-consistent shapes; tm=tk=128 -> 2x2 grid so the K-tiled
    # accumulator / finalize path is actually exercised.
    N, nfeat, nhid, nclass = 256, 32, 32, 16

    key = jax.random.PRNGKey(0)
    kx, ka, k1, k2, k3, k4, k5, k6 = jax.random.split(key, 8)

    x = jax.random.normal(kx, (N, nfeat), dtype=jnp.float32)

    # Symmetric row-normalized adjacency (dense), deterministic.
    a = (jax.random.uniform(ka, (N, N)) > 0.8).astype(jnp.float32)
    a = jnp.maximum(a, a.T) + jnp.eye(N, dtype=jnp.float32)
    adj = a / jnp.sum(a, axis=1, keepdims=True)

    # Deterministic parameter init (uniform, Glorot-ish scale).
    def init(k, shape, scale):
        return jax.random.uniform(k, shape, jnp.float32, -scale, scale)

    w1 = init(k1, (nfeat, nhid), 1.0 / (nfeat ** 0.5))
    b1 = init(k2, (1, nhid), 1.0 / (nfeat ** 0.5))
    w2 = init(k3, (nhid, nclass), 1.0 / (nhid ** 0.5))
    b2 = init(k4, (1, nclass), 1.0 / (nhid ** 0.5))
    wfc = init(k5, (nclass, 1), 1.0 / (nclass ** 0.5))
    bfc = init(k6, (1, 1), 1.0 / (nclass ** 0.5))

    pred = jax.block_until_ready(
        gcn_forward(x, adj, w1, b1, w2, b2, wfc, bfc, tm=128, tk=128))

    ref_bf16 = gcn_reference_bf16(x, adj, w1, b1, w2, b2, wfc, bfc)
    ref_f32 = gcn_reference_f32(x, adj, w1, b1, w2, b2, wfc, bfc)

    assert pred.shape == (N,)
    # Tight check against a reference with identical bf16/f32-acc numerics.
    assert jnp.allclose(pred, ref_bf16, atol=1e-2, rtol=1e-2)
    # Loose sanity check against the pure-f32 reference semantics.
    assert jnp.allclose(pred, ref_f32, atol=5e-2, rtol=5e-2)
    print("KERNEL_OK")
</pallas_src>

<mosaic_0001>
module attributes {stable_mosaic.version = 11 : i64} {
  func.func @xw_kernel(%arg0: i32, %arg1: memref<128x32xbf16, #tpu.memory_space<vmem>>, %arg2: memref<32x32xbf16, #tpu.memory_space<vmem>>, %arg3: memref<128x32xbf16, #tpu.memory_space<vmem>>) attributes {dimension_semantics = [#tpu.dimension_semantics<parallel>], iteration_bounds = array<i64: 2>, scalar_prefetch = 0 : i64, scratch_operands = 0 : i64, tpu.core_type = #tpu.core_type<tc>, window_params = [{transform_indices = @transform_0, window_bounds = array<i64: 128, 32>}, {pipeline_mode = #tpu.pipeline_mode<synchronous>, transform_indices = @transform_1, window_bounds = array<i64: 32, 32>}, {transform_indices = @transform_2, window_bounds = array<i64: 128, 32>}]} {
    %c0 = arith.constant 0 : index
    %c0_0 = arith.constant 0 : index
    %0 = vector.load %arg1[%c0, %c0_0] : memref<128x32xbf16, #tpu.memory_space<vmem>>, vector<128x32xbf16>
    %c0_1 = arith.constant 0 : index
    %c0_2 = arith.constant 0 : index
    %1 = vector.load %arg2[%c0_1, %c0_2] : memref<32x32xbf16, #tpu.memory_space<vmem>>, vector<32x32xbf16>
    %cst = arith.constant dense<0.000000e+00> : vector<128x32xf32>
    %2 = tpu.matmul %0, %1, %cst {dimension_numbers = #tpu.dot_dimension_numbers<[1], [0], [0], [1], [0, 0, 1, 1], [], []>} : vector<128x32xbf16>, vector<32x32xbf16>, vector<128x32xf32> -> vector<128x32xf32>
    %3 = arith.truncf %2 : vector<128x32xf32> to vector<128x32xbf16>
    %c0_3 = arith.constant 0 : index
    %c0_4 = arith.constant 0 : index
    %4 = vector.load %arg3[%c0_3, %c0_4] : memref<128x32xbf16, #tpu.memory_space<vmem>>, vector<128x32xbf16>
    tpu.vector_store %arg3[%c0_3, %c0_4], %3 {strides = array<i32>} : memref<128x32xbf16, #tpu.memory_space<vmem>>, vector<128x32xbf16>,
    return
  }
  func.func @transform_0(%arg0: i32) -> (i32, i32) {
    %c0_i32 = arith.constant 0 : i32
    %c0_i32_0 = arith.constant 0 : i32
    return %arg0, %c0_i32 : i32, i32
  }
  func.func @transform_1(%arg0: i32) -> (i32, i32) {
    %c0_i32 = arith.constant 0 : i32
    %c0_i32_0 = arith.constant 0 : i32
    %c0_i32_1 = arith.constant 0 : i32
    return %c0_i32, %c0_i32_0 : i32, i32
  }
  func.func @transform_2(%arg0: i32) -> (i32, i32) {
    %c0_i32 = arith.constant 0 : i32
    %c0_i32_0 = arith.constant 0 : i32
    return %arg0, %c0_i32 : i32, i32
  }
}

</mosaic_0001>

<llo_original>
// kernel: tpu_custom_call.1
$region0: #{tpu_custom_call.1}
  #allocation0 [shape = 'u32[]', space=smem, size = 0x4, offset = 0x4, fixed_abs, tag = 'smem constant byte address 0x4 - core index']
  #allocation1 [shape = 'u32[144,128]{1,0:T(1,128)}', space=vmem, size = 0x12000, scoped, tag = 'internal scratch']
  %s0 = inlined_call_operand.vmem [shape: bf16[256,32], index: 0, kind: input, shape index: {}]
  %s1 = inlined_call_operand.vmem [shape: bf16[32,32], index: 1, kind: input, shape index: {}]
  %s2 = inlined_call_operand.vmem [shape: bf16[256,32], index: 2, kind: output, shape index: {}]
  %s3 = sld [smem:[#allocation0]]
  $region41: #{tpu_custom_call.1} parent=0
    _
  %s5 = ssub.s32 1, %s3
  %s6 = scalar_select 0, %s5, %s3
  loop: start=0, step=1, limit=4
  $region2: #{tpu_custom_call.1} parent=0 // loop_pre_header
    _
  $region3: #{tpu_custom_call.1} parent=0 // loop_header
    %s8 = sphi 0, %s12
    %p9 = scmp.ge.s32.totalorder %s8, 4
    %s18 = sphi 0, %s20
    %s21 = sphi 0, %s18
    %s22 = sphi 0, %s21
    %s38 = sphi 0, %s22
    %s42 = sphi 0, %s42
    %s44 = sphi 0, %s42
    %s45 = sphi 0, %s44
    %s59 = sphi 0, %s45
    %s65 = sphi 0, %s67
    %s68 = sphi 0, %s65
    %s69 = sphi 0, %s68
    %s85 = sphi 0, %s69
  $region4: #{tpu_custom_call.1} parent=0 // loop_header_branch
    %11 = sbr.rel (%p9) target = $region8
  $region5: #{tpu_custom_call.1} parent=0 // loop_body
    %s13 = ssub.s32 %s8, 1
    %s14 = ssub.s32 %s8, 2
    %s15 = sadd.s32 %s8, 1
    %s16 = ssub.s32 %s8, %s15
    %p17 = scmp.eq.s32.totalorder %s16, 0
    %s19 = sadd.s32 %s18, 1
    %s20 = scalar_select %p17, %s18, %s19
    %p23 = pneg %p17
    %p24 = scmp.eq.s32.totalorder %s8, 1
    %p25 = por %p23, %p24
    %p26 = scmp.ne.s32.totalorder %s18, %s21
    %p27 = scmp.eq.s32.totalorder %s8, 0
    %p28 = por %p26, %p27
    %p29 = scmp.ne.s32.totalorder %s18, %s21
    %p30 = scmp.eq.s32.totalorder %s13, 1
    %p31 = por %p29, %p30
    %p32 = scmp.ne.s32.totalorder %s21, %s22
    %p33 = scmp.eq.s32.totalorder %s13, 0
    %p34 = por %p32, %p33
    %p35 = scmp.ne.s32.totalorder %s21, %s22
    %p36 = scmp.eq.s32.totalorder %s14, 1
    %p37 = por %p35, %p36
    %p39 = scmp.ne.s32.totalorder %s22, %s38
    %p40 = scmp.eq.s32.totalorder %s14, 0
    %p41 = por %p39, %p40
    %s43 = sadd.s32 %s42, 1
    %p46 = scmp.eq.s32.totalorder %s8, 1
    %p47 = scmp.ne.s32.totalorder %s42, %s44
    %p48 = scmp.eq.s32.totalorder %s8, 0
    %p49 = por %p47, %p48
    %p50 = scmp.ne.s32.totalorder %s42, %s44
    %p51 = scmp.eq.s32.totalorder %s13, 1
    %p52 = por %p50, %p51
    %p53 = scmp.ne.s32.totalorder %s44, %s45
    %p54 = scmp.eq.s32.totalorder %s13, 0
    %p55 = por %p53, %p54
    %p56 = scmp.ne.s32.totalorder %s44, %s45
    %p57 = scmp.eq.s32.totalorder %s14, 1
    %p58 = por %p56, %p57
    %p60 = scmp.ne.s32.totalorder %s45, %s59
    %p61 = scmp.eq.s32.totalorder %s14, 0
    %p62 = por %p60, %p61
    %s63 = ssub.s32 %s8, %s15
    %p64 = scmp.eq.s32.totalorder %s63, 0
    %s66 = sadd.s32 %s65, 1
    %s67 = scalar_select %p64, %s65, %s66
    %p70 = pneg %p64
    %p71 = scmp.eq.s32.totalorder %s8, 1
    %p72 = por %p70, %p71
    %p73 = scmp.ne.s32.totalorder %s65, %s68
    %p74 = scmp.eq.s32.totalorder %s8, 0
    %p75 = por %p73, %p74
    %p76 = scmp.ne.s32.totalorder %s65, %s68
    %p77 = scmp.eq.s32.totalorder %s13, 1
    %p78 = por %p76, %p77
    %p79 = scmp.ne.s32.totalorder %s68, %s69
    %p80 = scmp.eq.s32.totalorder %s13, 0
    %p81 = por %p79, %p80
    %p82 = scmp.ne.s32.totalorder %s68, %s69
    %p83 = scmp.eq.s32.totalorder %s14, 1
    %p84 = por %p82, %p83
    %p86 = scmp.ne.s32.totalorder %s69, %s85
    %p87 = scmp.eq.s32.totalorder %s14, 0
    %p88 = por %p86, %p87
    %p89 = scmp.le.s32.totalorder 1, %s8
    %p90 = scmp.lt.s32.totalorder %s8, 3
    %p91 = pnand %p89, %p90
    %p92 = pneg %p91
    // Predicated region
    $region9: #{tpu_custom_call.1} parent=5 // pred_check
      _
    $region10: #{tpu_custom_call.1} parent=5 // pred_check_branch
      %94 = sbr.rel (%p91) target = $region12
    $region11: #{tpu_custom_call.1} parent=5 // pred_region
      %s95 = ssub.s32 %s8, 1
      // Predicated region
      $region13: #{tpu_custom_call.1} parent=11 // pred_check
        %p96 = pneg %p55
      $region14: #{tpu_custom_call.1} parent=11 // pred_check_branch
        %98 = sbr.rel (%p96) target = $region16
      $region15: #{tpu_custom_call.1} parent=11 // pred_region
        _
      $region16: #{tpu_custom_call.1} parent=11 // pred_fallthru
        _
    $region12: #{tpu_custom_call.1} parent=5 // pred_fallthru
      _
    %p99 = scmp.lt.s32.totalorder %s8, 2
    // Predicated region
    $region17: #{tpu_custom_call.1} parent=5 // pred_check
      %p100 = pneg %p99
    $region18: #{tpu_custom_call.1} parent=5 // pred_check_branch
      %102 = sbr.rel (%p100) target = $region20
    $region19: #{tpu_custom_call.1} parent=5 // pred_region
      // Predicated region
      $region21: #{tpu_custom_call.1} parent=19 // pred_check
        %p103 = pneg %p28
      $region22: #{tpu_custom_call.1} parent=19 // pred_check_branch
        %105 = sbr.rel (%p103) target = $region24
      $region23: #{tpu_custom_call.1} parent=19 // pred_region
        %s106 = smul.u32 16, %s8
        %p107 = scmp.lt.s32.totalorder %s106, 31
        %s108 = scalar_select %p107, %s106, 31
        %s109 = smul.addr %s108, 4
        %s110 = scalar_lea.vmem %s0, %s109
        %s111 = smul.u32 16, %s8
      $region24: #{tpu_custom_call.1} parent=19 // pred_fallthru
        _
    $region20: #{tpu_custom_call.1} parent=5 // pred_fallthru
      _
    %p112 = scmp.le.s32.totalorder 1, %s8
    %p113 = scmp.lt.s32.totalorder %s8, 3
    %p114 = pnand %p112, %p113
    %p115 = pneg %p114
    // Predicated region
    $region25: #{tpu_custom_call.1} parent=5 // pred_check
      _
    $region26: #{tpu_custom_call.1} parent=5 // pred_check_branch
      %117 = sbr.rel (%p114) target = $region28
    $region27: #{tpu_custom_call.1} parent=5 // pred_region
      %s118 = ssub.s32 %s8, 1
      %s119 = smul.u32 16, %s13
      %p120 = scmp.lt.s32.totalorder %s119, 31
      %s121 = scalar_select %p120, %s119, 31
      %s122 = smul.addr %s121, 4
      %s123 = scalar_lea.vmem %s0, %s122
      %p124 = pneg %p34
      %p125 = pneg %p31
      %p126 = pneg %p55
      %p127 = pneg %p52
      %p128 = pneg %p81
      %p129 = pneg %p78
      %s130 = smul.u32 16, %s13
      %p131 = scmp.lt.s32.totalorder %s130, 31
      %s132 = scalar_select %p131, %s130, 31
      %s133 = smul.addr %s132, 4
      %s134 = scalar_lea.vmem %s2, %s133
      %s135 = smul.u32 16, %s13
      %p136 = scmp.lt.s32.totalorder %s135, 31
      %s137 = scalar_select %p136, %s135, 31
      %s138 = smul.addr %s137, 4
      %s139 = scalar_lea.vmem %s0, %s138
      %s140 = smul.u32 16, %s13
      %s141 = smul.u32 16, %s13
      %p142 = scmp.lt.s32.totalorder %s141, 31
      %s143 = scalar_select %p142, %s141, 31
      %s144 = smul.addr %s143, 4
      %s145 = scalar_lea.vmem %s2, %s144
      %s146 = smul.u32 16, %s13
      %v148 = vld [vmem:[%s139] sm:$0xf]
      %v149 = vld [vmem:[%s139 + $0x4] sm:$0xf]
      %v150 = vld [vmem:[%s139 + $0x8] sm:$0xf]
      %v151 = vld [vmem:[%s139 + $0xc] sm:$0xf]
      %v152 = vld [vmem:[%s139 + $0x10] sm:$0xf]
      %v153 = vld [vmem:[%s139 + $0x14] sm:$0xf]
      %v154 = vld [vmem:[%s139 + $0x18] sm:$0xf]
      %v155 = vld [vmem:[%s139 + $0x1c] sm:$0xf]
      %v156 = vld [vmem:[%s139 + $0x20] sm:$0xf]
      %v157 = vld [vmem:[%s139 + $0x24] sm:$0xf]
      %v158 = vld [vmem:[%s139 + $0x28] sm:$0xf]
      %v159 = vld [vmem:[%s139 + $0x2c] sm:$0xf]
      %v160 = vld [vmem:[%s139 + $0x30] sm:$0xf]
      %v161 = vld [vmem:[%s139 + $0x34] sm:$0xf]
      %v162 = vld [vmem:[%s139 + $0x38] sm:$0xf]
      %v163 = vld [vmem:[%s139 + $0x3c] sm:$0xf]
      %v164 = vld [vmem:[%s1] sm:$0xf]
      %v165 = vld [vmem:[%s1 + $0x4] sm:$0xf]
      %v166 = vld [vmem:[%s1 + $0x8] sm:$0xf]
      %v167 = vld [vmem:[%s1 + $0xc] sm:$0xf]
      %v184 = vunpack.c.l.b16 %v148
      %v185 = vunpack.c.l.b16 %v149
      %v186 = vunpack.c.l.b16 %v150
      %v187 = vunpack.c.l.b16 %v151
      %v188 = vunpack.c.l.b16 %v152
      %v189 = vunpack.c.l.b16 %v153
      %v190 = vunpack.c.l.b16 %v154
      %v191 = vunpack.c.l.b16 %v155
      %v192 = vunpack.c.l.b16 %v156
      %v193 = vunpack.c.l.b16 %v157
      %v194 = vunpack.c.l.b16 %v158
      %v195 = vunpack.c.l.b16 %v159
      %v196 = vunpack.c.l.b16 %v160
      %v197 = vunpack.c.l.b16 %v161
      %v198 = vunpack.c.l.b16 %v162
      %v199 = vunpack.c.l.b16 %v163
      %v200 = vpack.c.b16 %v185, %v184
      %v201 = vpack.c.b16 %v187, %v186
      %v202 = vpack.c.b16 %v189, %v188
      %v203 = vpack.c.b16 %v191, %v190
      %v204 = vpack.c.b16 %v193, %v192
      %v205 = vpack.c.b16 %v195, %v194
      %v206 = vpack.c.b16 %v197, %v196
      %v207 = vpack.c.b16 %v199, %v198
      %v212 = vunpack.c.l.b16 %v164
      %v213 = vunpack.c.l.b16 %v165
      %v214 = vunpack.c.l.b16 %v166
      %v215 = vunpack.c.l.b16 %v167
      %v216 = vpack.c.b16 %v213, %v212
      %v217 = vpack.c.b16 %v215, %v214
      %vm220 = vcmask 261120
      %v222 = vsel %vm220, %v200, 0
      %v225 = vsel %vm220, %v201, 0
      %v228 = vsel %vm220, %v202, 0
      %v231 = vsel %vm220, %v203, 0
      %v234 = vsel %vm220, %v204, 0
      %v237 = vsel %vm220, %v205, 0
      %v240 = vsel %vm220, %v206, 0
      %v243 = vsel %vm220, %v207, 0
      %245 = vmatprep.subr.bf16.mxu0 0
      %246 = vmatpush1.bf16.msra.mxu0 0
      %247 = vmatprep.subr.bf16.mxu0 0
      %248 = vmatpush1.bf16.msra.mxu0 0
      %249 = vmatprep.subr.bf16.mxu0 0
      %250 = vmatpush1.bf16.msra.mxu0 0
      %251 = vmatprep.subr.bf16.mxu0 0
      %252 = vmatpush1.bf16.msra.mxu0 0
      %253 = vmatprep.subr.bf16.mxu0 0
      %254 = vmatpush1.bf16.msra.mxu0 0
      %255 = vmatprep.subr.bf16.mxu0 0
      %256 = vmatpush1.bf16.msra.mxu0 0
      %257 = vmatprep.subr.bf16.mxu0 0
      %258 = vmatpush1.bf16.msra.mxu0 %v217
      %259 = vmatprep.subr.bf16.mxu0 0
      %260 = vmatpush1.bf16.msra.mxu0 %v216
      %261 = vmatprep.subr.bf16.mxu0 0
      %262 = vmatpush2.bf16.msra.mxu0 0
      %263 = vmatprep.subr.bf16.mxu0 0
      %264 = vmatpush2.bf16.msra.mxu0 0
      %265 = vmatprep.subr.bf16.mxu0 0
      %266 = vmatpush2.bf16.msra.mxu0 0
      %267 = vmatprep.subr.bf16.mxu0 0
      %268 = vmatpush2.bf16.msra.mxu0 0
      %269 = vmatprep.subr.bf16.mxu0 0
      %270 = vmatpush2.bf16.msra.mxu0 0
      %271 = vmatprep.subr.bf16.mxu0 0
      %272 = vmatpush2.bf16.msra.mxu0 0
      %273 = vmatprep.subr.bf16.mxu0 0
      %274 = vmatpush2.bf16.msra.mxu0 0
      %275 = vmatprep.subr.bf16.mxu0 0
      %276 = vmatpush2.bf16.msra.mxu0 0
      %277 = vmatprep.mubr.bf16.mxu0 0
      %278 = vmatmul.mubr.bf16.gmra.mxu0 %v222
      %v279 = vpop.f32.mrf.mxu0
      %v280 = vadd.f32 0.0, %v279
      %v281 = vpop.f32.mrf.mxu0
      %v282 = vpop.f32.mrf.mxu0
      %v283 = vadd.f32 0.0, %v282
      %v284 = vpop.f32.mrf.mxu0
      %285 = vmatprep.mubr.bf16.mxu0 0
      %286 = vmatmul.mubr.bf16.gmra.mxu0 %v225
      %v287 = vpop.f32.mrf.mxu0
      %v288 = vadd.f32 0.0, %v287
      %v289 = vpop.f32.mrf.mxu0
      %v290 = vpop.f32.mrf.mxu0
      %v291 = vadd.f32 0.0, %v290
      %v292 = vpop.f32.mrf.mxu0
      %293 = vmatprep.mubr.bf16.mxu0 0
      %294 = vmatmul.mubr.bf16.gmra.mxu0 %v228
      %v295 = vpop.f32.mrf.mxu0
      %v296 = vadd.f32 0.0, %v295
      %v297 = vpop.f32.mrf.mxu0
      %v298 = vpop.f32.mrf.mxu0
      %v299 = vadd.f32 0.0, %v298
      %v300 = vpop.f32.mrf.mxu0
      %301 = vmatprep.mubr.bf16.mxu0 0
      %302 = vmatmul.mubr.bf16.gmra.mxu0 %v231
      %v303 = vpop.f32.mrf.mxu0
      %v304 = vadd.f32 0.0, %v303
      %v305 = vpop.f32.mrf.mxu0
      %v306 = vpop.f32.mrf.mxu0
      %v307 = vadd.f32 0.0, %v306
      %v308 = vpop.f32.mrf.mxu0
      %309 = vmatprep.mubr.bf16.mxu0 0
      %310 = vmatmul.mubr.bf16.gmra.mxu0 %v234
      %v311 = vpop.f32.mrf.mxu0
      %v312 = vadd.f32 0.0, %v311
      %v313 = vpop.f32.mrf.mxu0
      %v314 = vpop.f32.mrf.mxu0
      %v315 = vadd.f32 0.0, %v314
      %v316 = vpop.f32.mrf.mxu0
      %317 = vmatprep.mubr.bf16.mxu0 0
      %318 = vmatmul.mubr.bf16.gmra.mxu0 %v237
      %v319 = vpop.f32.mrf.mxu0
      %v320 = vadd.f32 0.0, %v319
      %v321 = vpop.f32.mrf.mxu0
      %v322 = vpop.f32.mrf.mxu0
      %v323 = vadd.f32 0.0, %v322
      %v324 = vpop.f32.mrf.mxu0
      %325 = vmatprep.mubr.bf16.mxu0 0
      %326 = vmatmul.mubr.bf16.gmra.mxu0 %v240
      %v327 = vpop.f32.mrf.mxu0
      %v328 = vadd.f32 0.0, %v327
      %v329 = vpop.f32.mrf.mxu0
      %v330 = vpop.f32.mrf.mxu0
      %v331 = vadd.f32 0.0, %v330
      %v332 = vpop.f32.mrf.mxu0
      %333 = vmatprep.mubr.bf16.mxu0 0
      %334 = vmatmul.mubr.bf16.gmra.mxu0 %v243
      %v335 = vpop.f32.mrf.mxu0
      %v336 = vadd.f32 0.0, %v335
      %v337 = vpop.f32.mrf.mxu0
      %v338 = vpop.f32.mrf.mxu0
      %v339 = vadd.f32 0.0, %v338
      %v340 = vpop.f32.mrf.mxu0
      %341 = vdwg.mxu0
      %v342 = vpack.c.bf16 %v283, %v280
      %v343 = vpack.c.bf16 %v291, %v288
      %v344 = vpack.c.bf16 %v299, %v296
      %v345 = vpack.c.bf16 %v307, %v304
      %v346 = vpack.c.bf16 %v315, %v312
      %v347 = vpack.c.bf16 %v323, %v320
      %v348 = vpack.c.bf16 %v331, %v328
      %v349 = vpack.c.bf16 %v339, %v336
      %v358 = vunpack.c.l.b16 %v342
      %v359 = vunpack.c.h.b16 %v342
      %v360 = vunpack.c.l.b16 %v343
      %v361 = vunpack.c.h.b16 %v343
      %v362 = vunpack.c.l.b16 %v344
      %v363 = vunpack.c.h.b16 %v344
      %v364 = vunpack.c.l.b16 %v345
      %v365 = vunpack.c.h.b16 %v345
      %v366 = vunpack.c.l.b16 %v346
      %v367 = vunpack.c.h.b16 %v346
      %v368 = vunpack.c.l.b16 %v347
      %v369 = vunpack.c.h.b16 %v347
      %v370 = vunpack.c.l.b16 %v348
      %v371 = vunpack.c.h.b16 %v348
      %v372 = vunpack.c.l.b16 %v349
      %v373 = vunpack.c.h.b16 %v349
      %v374 = vpack.c.b16 %v358, %v358
      %v375 = vpack.c.b16 %v359, %v359
      %v376 = vpack.c.b16 %v360, %v360
      %v377 = vpack.c.b16 %v361, %v361
      %v378 = vpack.c.b16 %v362, %v362
      %v379 = vpack.c.b16 %v363, %v363
      %v380 = vpack.c.b16 %v364, %v364
      %v381 = vpack.c.b16 %v365, %v365
      %v382 = vpack.c.b16 %v366, %v366
      %v383 = vpack.c.b16 %v367, %v367
      %v384 = vpack.c.b16 %v368, %v368
      %v385 = vpack.c.b16 %v369, %v369
      %v386 = vpack.c.b16 %v370, %v370
      %v387 = vpack.c.b16 %v371, %v371
      %v388 = vpack.c.b16 %v372, %v372
      %v389 = vpack.c.b16 %v373, %v373
      %vm406 = vcmask 257024
      %407 = vst.msk [vmem:[%s145] sm:$0xf] %vm406, %v374
      %408 = vst.msk [vmem:[%s145 + $0x4] sm:$0xf] %vm406, %v375
      %409 = vst.msk [vmem:[%s145 + $0x8] sm:$0xf] %vm406, %v376
      %410 = vst.msk [vmem:[%s145 + $0xc] sm:$0xf] %vm406, %v377
      %411 = vst.msk [vmem:[%s145 + $0x10] sm:$0xf] %vm406, %v378
      %412 = vst.msk [vmem:[%s145 + $0x14] sm:$0xf] %vm406, %v379
      %413 = vst.msk [vmem:[%s145 + $0x18] sm:$0xf] %vm406, %v380
      %414 = vst.msk [vmem:[%s145 + $0x1c] sm:$0xf] %vm406, %v381
      %415 = vst.msk [vmem:[%s145 + $0x20] sm:$0xf] %vm406, %v382
      %416 = vst.msk [vmem:[%s145 + $0x24] sm:$0xf] %vm406, %v383
      %417 = vst.msk [vmem:[%s145 + $0x28] sm:$0xf] %vm406, %v384
      %418 = vst.msk [vmem:[%s145 + $0x2c] sm:$0xf] %vm406, %v385
      %419 = vst.msk [vmem:[%s145 + $0x30] sm:$0xf] %vm406, %v386
      %420 = vst.msk [vmem:[%s145 + $0x34] sm:$0xf] %vm406, %v387
      %421 = vst.msk [vmem:[%s145 + $0x38] sm:$0xf] %vm406, %v388
      %422 = vst.msk [vmem:[%s145 + $0x3c] sm:$0xf] %vm406, %v389
      %s423 = smul.u32 16, %s13
      %p424 = scmp.lt.s32.totalorder %s423, 31
      %s425 = scalar_select %p424, %s423, 31
      %s426 = smul.addr %s425, 4
      %s427 = scalar_lea.vmem %s2, %s426
      // Predicated region
      $region29: #{tpu_custom_call.1} parent=27 // pred_check
        %p428 = pneg %p78
      $region30: #{tpu_custom_call.1} parent=27 // pred_check_branch
        %430 = sbr.rel (%p428) target = $region32
      $region31: #{tpu_custom_call.1} parent=27 // pred_region
        %s431 = smul.u32 16, %s13
      $region32: #{tpu_custom_call.1} parent=27 // pred_fallthru
        _
    $region28: #{tpu_custom_call.1} parent=5 // pred_fallthru
      _
    %p432 = scmp.le.s32.totalorder 2, %s8
    // Predicated region
    $region33: #{tpu_custom_call.1} parent=5 // pred_check
      %p433 = pneg %p432
    $region34: #{tpu_custom_call.1} parent=5 // pred_check_branch
      %435 = sbr.rel (%p433) target = $region36
    $region35: #{tpu_custom_call.1} parent=5 // pred_region
      %s436 = ssub.s32 %s8, 2
      // Predicated region
      $region37: #{tpu_custom_call.1} parent=35 // pred_check
        %p437 = pneg %p84
      $region38: #{tpu_custom_call.1} parent=35 // pred_check_branch
        %439 = sbr.rel (%p437) target = $region40
      $region39: #{tpu_custom_call.1} parent=35 // pred_region
        %s440 = smul.u32 16, %s14
        %p441 = scmp.lt.s32.totalorder %s440, 31
        %s442 = scalar_select %p441, %s440, 31
        %s443 = smul.addr %s442, 4
        %s444 = scalar_lea.vmem %s2, %s443
      $region40: #{tpu_custom_call.1} parent=35 // pred_fallthru
        _
    $region36: #{tpu_custom_call.1} parent=5 // pred_fallthru
      _
  $region6: #{tpu_custom_call.1} parent=0 // loop_footer
    %s12 = sadd.s32 1, %s8
  $region7: #{tpu_custom_call.1} parent=0 // loop_footer_branch
    %7 = sbr.rel target = $region3
  $region8: #{tpu_custom_call.1} parent=0 // loop_exit
    _

</llo_original>
